<compile_context>
chip_gen: v5e
topology: v5e:2x2
jax: 0.10.0
libtpu: 0.0.40
codegen_flags: <defaults>
</compile_context>

<pallas_src>
import jax
import jax.numpy as jnp
from jax.experimental import pallas as pl
from jax.experimental.pallas import tpu as pltpu


def _pad_masking_kernel(row_ref, o_ref):
    # row_ref: (1, 1, tn) int8  -- one batch's padded row slice.
    # o_ref:   (1, tq, tn) bool -- broadcast of the row down the query axis.
    # Compare on the small row only (tn elems), then a pure sublane broadcast
    # and a lane-dense full-width store; the kernel stays HBM-writeback bound.
    o_ref[...] = jnp.broadcast_to(row_ref[...] != 0, o_ref.shape)


def _per_buffer_budget_bytes() -> int:
    """Per-buffer output-tile byte budget, chosen by TPU generation."""
    try:
        kind = jax.devices()[0].device_kind.lower()
    except Exception:  # pragma: no cover - defensive
        kind = ""
    if "v5 lite" in kind or "v5e" in kind or "v5litepod" in kind:
        return 4 << 20          # 16 MiB default scoped VMEM: stay small.
    if "v6" in kind or "trillium" in kind or "v7" in kind:
        return 8 << 20          # 32 MiB scoped default; v7x: 64 MiB physical.
    return 4 << 20              # Unknown / older generations: conservative.


def _pick_tiles(S: int, T: int, budget_bytes: int) -> tuple[int, int]:
    # Lane axis: keep the full row width whenever even an 8-row strip fits the
    # budget (contiguous unmasked writebacks, no t grid axis in practice);
    # otherwise tile in multiples of 128 (ragged final lane block is masked).
    if T <= 128 or 8 * T <= budget_bytes:
        tn = T
    else:
        tn = max(128, ((budget_bytes // 8) // 128) * 128)
        tn = min(tn, T)
    # Query axis: multiples of 8 grown toward S under the byte budget; rely on
    # masked partial final blocks when S is not a multiple of the tile.  A
    # full-S block (== full dim) is always legal, even if S % 8 != 0.
    if S <= 8:
        tq = S
    else:
        tq = min(S, max(8, budget_bytes // max(tn, 1)))
        if tq != S:
            tq = max(8, (tq // 8) * 8)
    return tq, tn


def _sanitize_tq(tq: int, S: int) -> int:
    """Clamp/round a user-supplied query tile to a lowering-legal value."""
    tq = max(1, min(int(tq), S))
    if tq == S or tq % 8 == 0:
        return tq
    tq = (tq // 8) * 8
    return tq if tq >= 8 else S


def _sanitize_tn(tn: int, T: int) -> int:
    """Clamp/round a user-supplied lane tile to a lowering-legal value."""
    tn = max(1, min(int(tn), T))
    if tn == T or tn % 128 == 0:
        return tn
    tn = (tn // 128) * 128
    return tn if tn >= 128 else T


def pad_masking(x: jax.Array, pad_idx: int, offset: int = 0,
                *, tq: int | None = None, tn: int | None = None) -> jax.Array:
    """Pallas implementation of PadMasking.forward for 2-D x (B, S)."""
    assert x.ndim == 2, "this wrapper handles x of shape (batch, seq)"
    assert offset >= 0
    B, S = x.shape
    T = offset + S

    # Tiny (B, 1, T) padded row mask computed in plain JAX (B*T bytes).
    is_pad = (x == pad_idx).astype(jnp.int8)[:, None, :]               # (B,1,S)
    if offset > 0:
        row = jnp.concatenate(
            [jnp.zeros((B, 1, offset), jnp.int8), is_pad], axis=-1)    # (B,1,T)
    else:
        row = is_pad

    budget = _per_buffer_budget_bytes()
    dq, dn = _pick_tiles(S, T, budget)
    tq = dq if tq is None else _sanitize_tq(tq, S)
    tn = dn if tn is None else _sanitize_tn(tn, T)

    nq = pl.cdiv(S, tq)
    nt = pl.cdiv(T, tn)
    # q innermost: the row-slice block index is constant across the innermost
    # grid axis, so its re-DMA is skipped; all axes are independent.
    grid = (B, nt, nq)

    # Advisory: this kernel only writes the (B,S,T) bool output and reads the
    # (B,1,T) row (it never touches x).
    cost = pl.CostEstimate(
        flops=0,
        transcendentals=0,
        bytes_accessed=B * S * T + B * T,
    )

    return pl.pallas_call(
        _pad_masking_kernel,
        out_shape=jax.ShapeDtypeStruct((B, S, T), jnp.bool_),
        grid_spec=pltpu.PrefetchScalarGridSpec(
            num_scalar_prefetch=0,
            grid=grid,
            in_specs=[pl.BlockSpec((1, 1, tn), lambda b, t, q: (b, 0, t))],
            out_specs=pl.BlockSpec((1, tq, tn), lambda b, t, q: (b, q, t)),
        ),
        compiler_params=pltpu.CompilerParams(
            dimension_semantics=("parallel", "parallel", "parallel"),
            # 2 x (<=8 MiB out tile) + row + headroom; <= physical VMEM on
            # every generation (v7x: 64 MiB).
            vmem_limit_bytes=32 * 1024 * 1024,
        ),
        cost_estimate=cost,
    )(row)


def pad_masking_ref(x: jax.Array, pad_idx: int, offset: int = 0) -> jax.Array:
    """Pure-JAX reference mirroring the PyTorch module."""
    B, S = x.shape
    is_pad = (x == pad_idx)[:, None, :]                      # (B, 1, S)
    shifted = jnp.zeros((B, 1, offset), dtype=jnp.bool_)     # (B, 1, offset)
    mask = jnp.concatenate([shifted, is_pad], axis=-1)       # (B, 1, offset+S)
    return jnp.broadcast_to(mask, (B, S, offset + S))


if __name__ == "__main__":
    PAD_IDX = 0
    k0, k1, k2 = jax.random.split(jax.random.PRNGKey(0), 3)

    # Small config consistent with the module: batch=2, seq=8, offset=4.
    B, S, OFFSET = 2, 8, 4
    x = jax.random.randint(k0, (B, S), minval=0, maxval=5, dtype=jnp.int32)

    out = jax.block_until_ready(pad_masking(x, PAD_IDX, OFFSET))
    ref = pad_masking_ref(x, PAD_IDX, OFFSET)
    assert out.shape == (B, S, OFFSET + S), out.shape
    assert out.dtype == jnp.bool_, out.dtype
    assert bool(jnp.array_equal(out, ref)), "mismatch vs reference (offset=4)"

    # offset=0 path.
    out0 = jax.block_until_ready(pad_masking(x, PAD_IDX, 0))
    assert bool(jnp.array_equal(out0, pad_masking_ref(x, PAD_IDX, 0))), \
        "mismatch vs reference (offset=0)"

    # Multi-tile query-axis path with an explicit small tile.
    B2, S2, OFF2 = 2, 24, 4
    x2 = jax.random.randint(k1, (B2, S2), minval=0, maxval=5, dtype=jnp.int32)
    out2 = jax.block_until_ready(pad_masking(x2, PAD_IDX, OFF2, tq=8))
    assert bool(jnp.array_equal(out2, pad_masking_ref(x2, PAD_IDX, OFF2))), \
        "mismatch vs reference (tiled query axis)"

    # S not a multiple of 8: ragged final query block (masked boundary writes).
    B3, S3, OFF3 = 2, 12, 4
    x3 = jax.random.randint(k2, (B3, S3), minval=0, maxval=5, dtype=jnp.int32)
    out3 = jax.block_until_ready(pad_masking(x3, PAD_IDX, OFF3, tq=8))
    assert bool(jnp.array_equal(out3, pad_masking_ref(x3, PAD_IDX, OFF3))), \
        "mismatch vs reference (ragged query axis)"

    print("KERNEL_OK")
</pallas_src>

<mosaic_0001>
module attributes {stable_mosaic.version = 11 : i64} {
  func.func @_pad_masking_kernel(%arg0: i32, %arg1: i32, %arg2: i32, %arg3: memref<1x1x12xi8, #tpu.memory_space<vmem>>, %arg4: memref<1x8x12xi32, #tpu.memory_space<vmem>>) attributes {dimension_semantics = [#tpu.dimension_semantics<parallel>, #tpu.dimension_semantics<parallel>, #tpu.dimension_semantics<parallel>], iteration_bounds = array<i64: 2, 1, 1>, scalar_prefetch = 0 : i64, scratch_operands = 0 : i64, tpu.core_type = #tpu.core_type<tc>, window_params = [{transform_indices = @transform_0, window_bounds = array<i64: 1, 1, 12>}, {transform_indices = @transform_1, window_bounds = array<i64: 1, 8, 12>}]} {
    %c0 = arith.constant 0 : index
    %c0_0 = arith.constant 0 : index
    %c0_1 = arith.constant 0 : index
    %0 = vector.load %arg3[%c0, %c0_0, %c0_1] : memref<1x1x12xi8, #tpu.memory_space<vmem>>, vector<1x1x12xi8>
    %c0_i8 = arith.constant 0 : i8
    %1 = vector.broadcast %c0_i8 : i8 to vector<1x1x12xi8>
    %2 = arith.cmpi ne, %0, %1 : vector<1x1x12xi8>
    %3 = vector.shape_cast %2 : vector<1x1x12xi1> to vector<1x1x12xi1>
    %4 = vector.broadcast %3 : vector<1x1x12xi1> to vector<1x8x12xi1>
    %c0_2 = arith.constant 0 : index
    %c0_3 = arith.constant 0 : index
    %c0_4 = arith.constant 0 : index
    %5 = vector.load %arg4[%c0_2, %c0_3, %c0_4] : memref<1x8x12xi32, #tpu.memory_space<vmem>>, vector<1x8x12xi32>
    %6 = arith.extui %4 : vector<1x8x12xi1> to vector<1x8x12xi32>
    %cst = arith.constant dense<0> : vector<1x8x12xi32>
    %7 = arith.cmpi ne, %5, %cst : vector<1x8x12xi32>
    tpu.vector_store %arg4[%c0_2, %c0_3, %c0_4], %6 {strides = array<i32>} : memref<1x8x12xi32, #tpu.memory_space<vmem>>, vector<1x8x12xi32>,
    return
  }
  func.func @transform_0(%arg0: i32, %arg1: i32, %arg2: i32) -> (i32, i32, i32) {
    %c0_i32 = arith.constant 0 : i32
    %c0_i32_0 = arith.constant 0 : i32
    return %arg0, %c0_i32, %arg1 : i32, i32, i32
  }
  func.func @transform_1(%arg0: i32, %arg1: i32, %arg2: i32) -> (i32, i32, i32) {
    %c0_i32 = arith.constant 0 : i32
    return %arg0, %arg2, %arg1 : i32, i32, i32
  }
}

</mosaic_0001>

<llo_original>
// kernel: tpu_custom_call.1
$region0: #{tpu_custom_call.1}
  #allocation0 [shape = 'u32[]', space=smem, size = 0x4, offset = 0x4, fixed_abs, tag = 'smem constant byte address 0x4 - core index']
  #allocation1 [shape = 'u32[72,128]{1,0:T(1,128)}', space=vmem, size = 0x9000, scoped, tag = 'internal scratch']
  %s0 = inlined_call_operand.vmem [shape: s8[2,1,12], index: 0, kind: input, shape index: {}]
  %s1 = inlined_call_operand.vmem [shape: s32[2,8,12], index: 1, kind: output, shape index: {}]
  %s2 = sld [smem:[#allocation0]]
  $region37: #{tpu_custom_call.1} parent=0
    _
  %s4 = ssub.s32 1, %s2
  %s5 = scalar_select 0, %s4, %s2
  loop: start=0, step=1, limit=4
  $region2: #{tpu_custom_call.1} parent=0 // loop_pre_header
    _
  $region3: #{tpu_custom_call.1} parent=0 // loop_header
    %s7 = sphi 0, %s11
    %p8 = scmp.ge.s32.totalorder %s7, 4
    %s14 = sphi 0, %s33
    %s15 = sphi 0, %s29
    %s16 = sphi 0, %s25
    %s17 = sphi 0, %s14
    %s18 = sphi 0, %s15
    %s19 = sphi 0, %s16
    %s20 = sphi 0, %s17
    %s21 = sphi 0, %s18
    %s22 = sphi 0, %s19
    %s38 = sphi 0, %s40
    %s41 = sphi 0, %s38
    %s42 = sphi 0, %s41
    %s58 = sphi 0, %s42
    %s68 = sphi 0, %s70
    %s71 = sphi 0, %s68
    %s72 = sphi 0, %s71
    %s88 = sphi 0, %s72
  $region4: #{tpu_custom_call.1} parent=0 // loop_header_branch
    %10 = sbr.rel (%p8) target = $region8
  $region5: #{tpu_custom_call.1} parent=0 // loop_body
    %s12 = ssub.s32 %s7, 1
    %s13 = ssub.s32 %s7, 2
    %s23 = sadd.s32 1, %s16
    %p24 = scmp.ge.s32.totalorder %s23, 1
    %s25 = scalar_select %p24, 0, %s23
    %s26 = sadd.s32 1, %s15
    %s27 = scalar_select %p24, %s26, %s15
    %p28 = scmp.ge.s32.totalorder %s27, 1
    %s29 = scalar_select %p28, 0, %s27
    %s30 = sadd.s32 1, %s14
    %s31 = scalar_select %p28, %s30, %s14
    %p32 = scmp.ge.s32.totalorder %s31, 2
    %s33 = scalar_select %p32, 0, %s31
    %s34 = ssub.s32 %s14, %s33
    %s35 = ssub.s32 %s15, %s29
    %s36 = sor.u32 %s34, %s35
    %p37 = scmp.eq.s32.totalorder %s36, 0
    %s39 = sadd.s32 %s38, 1
    %s40 = scalar_select %p37, %s38, %s39
    %p43 = pneg %p37
    %p44 = scmp.eq.s32.totalorder %s7, 1
    %p45 = por %p43, %p44
    %p46 = scmp.ne.s32.totalorder %s38, %s41
    %p47 = scmp.eq.s32.totalorder %s7, 0
    %p48 = por %p46, %p47
    %p49 = scmp.ne.s32.totalorder %s38, %s41
    %p50 = scmp.eq.s32.totalorder %s12, 1
    %p51 = por %p49, %p50
    %p52 = scmp.ne.s32.totalorder %s41, %s42
    %p53 = scmp.eq.s32.totalorder %s12, 0
    %p54 = por %p52, %p53
    %p55 = scmp.ne.s32.totalorder %s41, %s42
    %p56 = scmp.eq.s32.totalorder %s13, 1
    %p57 = por %p55, %p56
    %p59 = scmp.ne.s32.totalorder %s42, %s58
    %p60 = scmp.eq.s32.totalorder %s13, 0
    %p61 = por %p59, %p60
    %s62 = ssub.s32 %s14, %s33
    %s63 = ssub.s32 %s16, %s25
    %s64 = sor.u32 %s62, %s63
    %s65 = ssub.s32 %s15, %s29
    %s66 = sor.u32 %s64, %s65
    %p67 = scmp.eq.s32.totalorder %s66, 0
    %s69 = sadd.s32 %s68, 1
    %s70 = scalar_select %p67, %s68, %s69
    %p73 = pneg %p67
    %p74 = scmp.eq.s32.totalorder %s7, 1
    %p75 = por %p73, %p74
    %p76 = scmp.ne.s32.totalorder %s68, %s71
    %p77 = scmp.eq.s32.totalorder %s7, 0
    %p78 = por %p76, %p77
    %p79 = scmp.ne.s32.totalorder %s68, %s71
    %p80 = scmp.eq.s32.totalorder %s12, 1
    %p81 = por %p79, %p80
    %p82 = scmp.ne.s32.totalorder %s71, %s72
    %p83 = scmp.eq.s32.totalorder %s12, 0
    %p84 = por %p82, %p83
    %p85 = scmp.ne.s32.totalorder %s71, %s72
    %p86 = scmp.eq.s32.totalorder %s13, 1
    %p87 = por %p85, %p86
    %p89 = scmp.ne.s32.totalorder %s72, %s88
    %p90 = scmp.eq.s32.totalorder %s13, 0
    %p91 = por %p89, %p90
    %p92 = scmp.le.s32.totalorder 1, %s7
    %p93 = scmp.lt.s32.totalorder %s7, 3
    %p94 = pnand %p92, %p93
    %p95 = pneg %p94
    // Predicated region
    $region9: #{tpu_custom_call.1} parent=5 // pred_check
      _
    $region10: #{tpu_custom_call.1} parent=5 // pred_check_branch
      %97 = sbr.rel (%p94) target = $region12
    $region11: #{tpu_custom_call.1} parent=5 // pred_region
      %s98 = ssub.s32 %s7, 1
    $region12: #{tpu_custom_call.1} parent=5 // pred_fallthru
      _
    %p99 = scmp.lt.s32.totalorder %s7, 2
    // Predicated region
    $region13: #{tpu_custom_call.1} parent=5 // pred_check
      %p100 = pneg %p99
    $region14: #{tpu_custom_call.1} parent=5 // pred_check_branch
      %102 = sbr.rel (%p100) target = $region16
    $region15: #{tpu_custom_call.1} parent=5 // pred_region
      // Predicated region
      $region17: #{tpu_custom_call.1} parent=15 // pred_check
        %p103 = pneg %p48
      $region18: #{tpu_custom_call.1} parent=15 // pred_check_branch
        %105 = sbr.rel (%p103) target = $region20
      $region19: #{tpu_custom_call.1} parent=15 // pred_region
        %p106 = scmp.lt.s32.totalorder %s14, 1
        %s107 = scalar_select %p106, %s14, 1
        %p108 = scmp.lt.s32.totalorder %s15, 0
        %s109 = scalar_select %p108, %s15, 0
        %s110 = sadd.s32 %s109, %s107
        %s111 = scalar_lea.vmem %s0, %s110
      $region20: #{tpu_custom_call.1} parent=15 // pred_fallthru
        _
    $region16: #{tpu_custom_call.1} parent=5 // pred_fallthru
      _
    %p112 = scmp.le.s32.totalorder 1, %s7
    %p113 = scmp.lt.s32.totalorder %s7, 3
    %p114 = pnand %p112, %p113
    %p115 = pneg %p114
    // Predicated region
    $region21: #{tpu_custom_call.1} parent=5 // pred_check
      _
    $region22: #{tpu_custom_call.1} parent=5 // pred_check_branch
      %117 = sbr.rel (%p114) target = $region24
    $region23: #{tpu_custom_call.1} parent=5 // pred_region
      %s118 = ssub.s32 %s7, 1
      %p119 = scmp.lt.s32.totalorder %s17, 1
      %s120 = scalar_select %p119, %s17, 1
      %p121 = scmp.lt.s32.totalorder %s18, 0
      %s122 = scalar_select %p121, %s18, 0
      %s123 = sadd.s32 %s122, %s120
      %s124 = scalar_lea.vmem %s0, %s123
      %p125 = pneg %p54
      %p126 = pneg %p51
      %p127 = pneg %p84
      %p128 = pneg %p81
      %p129 = scmp.lt.s32.totalorder %s17, 1
      %s130 = scalar_select %p129, %s17, 1
      %p131 = scmp.lt.s32.totalorder %s19, 0
      %s132 = scalar_select %p131, %s19, 0
      %p133 = scmp.lt.s32.totalorder %s18, 0
      %s134 = scalar_select %p133, %s18, 0
      %s135 = sadd.s32 %s134, %s132
      %s136 = sadd.s32 %s135, %s130
      %s137 = smul.addr %s136, 8
      %s138 = scalar_lea.vmem %s1, %s137
      %p139 = scmp.lt.s32.totalorder %s17, 1
      %s140 = scalar_select %p139, %s17, 1
      %p141 = scmp.lt.s32.totalorder %s18, 0
      %s142 = scalar_select %p141, %s18, 0
      %s143 = sadd.s32 %s142, %s140
      %s144 = scalar_lea.vmem %s0, %s143
      %p145 = scmp.lt.s32.totalorder %s17, 1
      %s146 = scalar_select %p145, %s17, 1
      %p147 = scmp.lt.s32.totalorder %s19, 0
      %s148 = scalar_select %p147, %s19, 0
      %p149 = scmp.lt.s32.totalorder %s18, 0
      %s150 = scalar_select %p149, %s18, 0
      %s151 = sadd.s32 %s150, %s148
      %s152 = sadd.s32 %s151, %s146
      %s153 = smul.addr %s152, 8
      %s154 = scalar_lea.vmem %s1, %s153
      %v157 = vld [vmem:[%s144] sm:$0x1]
      %vm158 = vnez %v157
      %v159 = vsel %vm158, 16843009, 0
      %v160 = vunpack.c.0.s8 %v159
      %vm161 = vcmp.ne.s32.totalorder %v160, 0
      %v162 = vsel %vm161, 1, 0
      %v163 = vperm.slane %v162, 0
      %vm164 = vcmp.eq.s32.totalorder %v163, 1
      %v165 = vsel %vm164, 1, 0
      %vm166 = vcmask 97280
      %167 = vst.msk [vmem:[%s154] sm:$0xff] %vm166, %v165
      %p168 = scmp.lt.s32.totalorder %s17, 1
      %s169 = scalar_select %p168, %s17, 1
      %p170 = scmp.lt.s32.totalorder %s19, 0
      %s171 = scalar_select %p170, %s19, 0
      %p172 = scmp.lt.s32.totalorder %s18, 0
      %s173 = scalar_select %p172, %s18, 0
      %s174 = sadd.s32 %s173, %s171
      %s175 = sadd.s32 %s174, %s169
      %s176 = smul.addr %s175, 8
      %s177 = scalar_lea.vmem %s1, %s176
      // Predicated region
      $region25: #{tpu_custom_call.1} parent=23 // pred_check
        %p178 = pneg %p81
      $region26: #{tpu_custom_call.1} parent=23 // pred_check_branch
        %180 = sbr.rel (%p178) target = $region28
      $region27: #{tpu_custom_call.1} parent=23 // pred_region
        _
      $region28: #{tpu_custom_call.1} parent=23 // pred_fallthru
        _
    $region24: #{tpu_custom_call.1} parent=5 // pred_fallthru
      _
    %p181 = scmp.le.s32.totalorder 2, %s7
    // Predicated region
    $region29: #{tpu_custom_call.1} parent=5 // pred_check
      %p182 = pneg %p181
    $region30: #{tpu_custom_call.1} parent=5 // pred_check_branch
      %184 = sbr.rel (%p182) target = $region32
    $region31: #{tpu_custom_call.1} parent=5 // pred_region
      %s185 = ssub.s32 %s7, 2
      // Predicated region
      $region33: #{tpu_custom_call.1} parent=31 // pred_check
        %p186 = pneg %p87
      $region34: #{tpu_custom_call.1} parent=31 // pred_check_branch
        %188 = sbr.rel (%p186) target = $region36
      $region35: #{tpu_custom_call.1} parent=31 // pred_region
        %p189 = scmp.lt.s32.totalorder %s20, 1
        %s190 = scalar_select %p189, %s20, 1
        %p191 = scmp.lt.s32.totalorder %s22, 0
        %s192 = scalar_select %p191, %s22, 0
        %p193 = scmp.lt.s32.totalorder %s21, 0
        %s194 = scalar_select %p193, %s21, 0
        %s195 = sadd.s32 %s194, %s192
        %s196 = sadd.s32 %s195, %s190
        %s197 = smul.addr %s196, 8
        %s198 = scalar_lea.vmem %s1, %s197
      $region36: #{tpu_custom_call.1} parent=31 // pred_fallthru
        _
    $region32: #{tpu_custom_call.1} parent=5 // pred_fallthru
      _
  $region6: #{tpu_custom_call.1} parent=0 // loop_footer
    %s11 = sadd.s32 1, %s7
  $region7: #{tpu_custom_call.1} parent=0 // loop_footer_branch
    %6 = sbr.rel target = $region3
  $region8: #{tpu_custom_call.1} parent=0 // loop_exit
    _

</llo_original>
